<compile_context>
chip_gen: v7x
topology: tpu7x:2x2x1
jax: 0.10.0
libtpu: 0.0.40
codegen_flags: <defaults>
</compile_context>

<pallas_src>
import jax
import jax.numpy as jnp
from jax.experimental import pallas as pl
from jax.experimental.pallas import tpu as pltpu


def slice_attention_kernel(x_ref, w1_ref, b1_ref, w2t_ref, b2_ref, o_ref):
    bblk, s, d = x_ref.shape

    # f32 copy of the block for the softmax / weighted-sum path.
    x3 = x_ref[...].astype(jnp.float32)                              # (Bblk, S, D)
    x2 = x3.reshape(bblk * s, d)                                     # free: merge leading dims

    # hidden = tanh(x @ W1 + b1)  -- MXU matmul, f32 accumulation (operands may be bf16).
    h = jnp.tanh(
        jnp.dot(x2.astype(w1_ref.dtype), w1_ref[...],
                preferred_element_type=jnp.float32)
        + b1_ref[...]
    )                                                                # (Bblk*S, H) f32

    # scores = h @ w2 + b2 as VPU multiply + lane reduce (avoids a terrible N=1 MXU matmul).
    scores = jnp.sum(h * w2t_ref[...], axis=-1, keepdims=True) + b2_ref[0, 0]   # (Bblk*S, 1)
    scores = scores.reshape(bblk, s, 1)                              # free: split per exam

    # Per-exam softmax over the slice axis. Exact normalization (no approx reciprocal).
    m = jnp.max(scores, axis=1, keepdims=True)                       # (Bblk, 1, 1)
    e = jnp.exp(scores - m)                                          # (Bblk, S, 1)
    w = e / jnp.sum(e, axis=1, keepdims=True)                        # (Bblk, S, 1)

    # Weighted sum over slices -> tile-dense (Bblk, D) output rows.
    o_ref[...] = jnp.sum(x3 * w, axis=1).astype(o_ref.dtype)         # (Bblk, D)


def _choose_bblk(B, S, D, itemsize=4, target_bytes=512 * 1024):
    """Pick exams/step: >=8 (dense 8-sublane output tiles), ~512 KiB x-block, >=2 steps if B allows."""
    per_exam = S * D * itemsize
    bblk = max(8, target_bytes // per_exam)
    half = ((pl.cdiv(B, 2) + 7) // 8) * 8          # ceil(B/2) rounded up to a multiple of 8
    bblk = min(bblk, max(8, half))                 # leave >=2 grid steps for v7x's 2 TensorCores
    bblk = min(bblk, ((B + 7) // 8) * 8)           # never bigger than the (padded) batch
    return int(bblk)


def slice_attention_batched(x, w1, b1, w2, b2, *, bblk=None, matmul_dtype=jnp.float32):
    """x: (B, S, D) -> (B, 1, D). Weights stay resident in VMEM across the batch grid."""
    B, S, D = x.shape
    Dw, H = w1.shape
    assert Dw == D

    if bblk is None:
        bblk = _choose_bblk(B, S, D, jnp.dtype(x.dtype).itemsize)
    n_steps = pl.cdiv(B, bblk)
    B_pad = n_steps * bblk
    if B_pad != B:
        # zero-padded exams produce finite (zero) outputs and are sliced off below
        x = jnp.concatenate([x, jnp.zeros((B_pad - B, S, D), x.dtype)], axis=0)

    w1m = w1.astype(matmul_dtype)                  # MXU operands (f32 by default, bf16 optional)
    b1r = jnp.reshape(b1, (1, H)).astype(jnp.float32)
    w2t = jnp.reshape(w2, (1, H)).astype(jnp.float32)   # pre-transposed row for the VPU dot
    b2s = jnp.reshape(b2, (1, 1)).astype(jnp.float32)

    out = pl.pallas_call(
        slice_attention_kernel,
        out_shape=jax.ShapeDtypeStruct((B_pad, D), x.dtype),
        grid=(n_steps,),
        in_specs=[
            pl.BlockSpec((bblk, S, D), lambda b: (b, 0, 0)),          # x: Bblk exams per step
            pl.BlockSpec((D, H), lambda b: (0, 0)),                   # W1: resident in VMEM
            pl.BlockSpec((1, H), lambda b: (0, 0)),                   # b1: resident
            pl.BlockSpec((1, H), lambda b: (0, 0)),                   # w2^T: resident
            pl.BlockSpec(memory_space=pltpu.MemorySpace.SMEM),        # b2: SMEM scalar
        ],
        out_specs=pl.BlockSpec((bblk, D), lambda b: (b, 0)),          # dense (Bblk, D) stores
        compiler_params=pltpu.CompilerParams(
            dimension_semantics=("parallel",),       # batch axis shards across TCs (v7x megacore)
            vmem_limit_bytes=32 * 1024 * 1024,       # explicit, safe on v5e/v6e/v7x
        ),
    )(x, w1m, b1r, w2t, b2s)

    return out[:B, None, :]                          # (B, 1, D) — keepdim=True per exam


def slice_attention(x, w1, b1, w2, b2, **kwargs):
    """Matches the PyTorch module: (S, D) -> (1, D); also accepts batched (B, S, D)."""
    if x.ndim == 2:
        return slice_attention_batched(x[None], w1, b1, w2, b2, **kwargs)[0]
    return slice_attention_batched(x, w1, b1, w2, b2, **kwargs)


def slice_attention_ref(x, w1, b1, w2, b2):
    # plain-JAX reference (single exam) for sanity checking
    h = jnp.tanh(x @ w1 + b1)
    scores = h @ w2 + b2
    weights = jax.nn.softmax(scores, axis=0)
    return jnp.sum(x * weights, axis=0, keepdims=True)


if __name__ == "__main__":
    # B exams, S=8 slices, MRNet-style feature dim D=256 (lane-dense), hidden H=128 (per module).
    # B=16 with Bblk=8 -> 2 grid steps (both v7x TensorCores active), dense (8,256) output tiles.
    B, S, D, H = 16, 8, 256, 128

    key = jax.random.PRNGKey(0)
    kx, k1, kb1, k2, kb2 = jax.random.split(key, 5)

    x = jax.random.normal(kx, (B, S, D), dtype=jnp.float32)

    # Deterministic parameter init (Linear-style uniform bounds), not a checkpoint load.
    lim1 = 1.0 / (D ** 0.5)
    w1 = jax.random.uniform(k1, (D, H), minval=-lim1, maxval=lim1, dtype=jnp.float32)
    b1 = jax.random.uniform(kb1, (1, H), minval=-lim1, maxval=lim1, dtype=jnp.float32)
    lim2 = 1.0 / (H ** 0.5)
    w2 = jax.random.uniform(k2, (H, 1), minval=-lim2, maxval=lim2, dtype=jnp.float32)
    b2 = jax.random.uniform(kb2, (1, 1), minval=-lim2, maxval=lim2, dtype=jnp.float32)

    ref = jax.vmap(lambda xb: slice_attention_ref(xb, w1, b1, w2, b2))(x)   # (B, 1, D)

    # Batched f32 run (default): exact softmax normalization -> tight tolerance.
    out = slice_attention(x, w1, b1, w2, b2)
    jax.block_until_ready(out)
    assert out.shape == (B, 1, D)
    assert jnp.allclose(out, ref, atol=1e-5, rtol=1e-4), float(jnp.max(jnp.abs(out - ref)))

    # Single-exam path (original module signature (S, D) -> (1, D)).
    out1 = slice_attention(x[0], w1, b1, w2, b2)
    jax.block_until_ready(out1)
    ref1 = slice_attention_ref(x[0], w1, b1, w2, b2)
    assert out1.shape == (1, D)
    assert jnp.allclose(out1, ref1, atol=1e-5, rtol=1e-4), float(jnp.max(jnp.abs(out1 - ref1)))

    # Optional bf16 MXU operands (f32 accumulation, f32 softmax/weighted-sum): relaxed tolerance.
    out_bf16 = slice_attention(x, w1, b1, w2, b2, matmul_dtype=jnp.bfloat16)
    jax.block_until_ready(out_bf16)
    assert out_bf16.shape == (B, 1, D)
    assert jnp.allclose(out_bf16, ref, atol=2e-2, rtol=2e-2), float(jnp.max(jnp.abs(out_bf16 - ref)))

    print("KERNEL_OK")
</pallas_src>

<mosaic_0001>
module attributes {stable_mosaic.version = 11 : i64} {
  func.func @slice_attention_kernel(%arg0: i32, %arg1: memref<8x8x256xf32, #tpu.memory_space<vmem>>, %arg2: memref<256x128xf32, #tpu.memory_space<vmem>>, %arg3: memref<1x128xf32, #tpu.memory_space<vmem>>, %arg4: memref<1x128xf32, #tpu.memory_space<vmem>>, %arg5: memref<1x1xf32, #tpu.memory_space<smem>>, %arg6: memref<8x256xf32, #tpu.memory_space<vmem>>) attributes {dimension_semantics = [#tpu.dimension_semantics<parallel>], iteration_bounds = array<i64: 2>, scalar_prefetch = 0 : i64, scratch_operands = 0 : i64, tpu.core_type = #tpu.core_type<tc>, window_params = [{transform_indices = @transform_0, window_bounds = array<i64: 8, 8, 256>}, {pipeline_mode = #tpu.pipeline_mode<synchronous>, transform_indices = @transform_1, window_bounds = array<i64: 256, 128>}, {pipeline_mode = #tpu.pipeline_mode<synchronous>, transform_indices = @transform_2, window_bounds = array<i64: 1, 128>}, {pipeline_mode = #tpu.pipeline_mode<synchronous>, transform_indices = @transform_3, window_bounds = array<i64: 1, 128>}, {transform_indices = @transform_4, window_bounds = array<i64: 1, 1>}, {transform_indices = @transform_5, window_bounds = array<i64: 8, 256>}]} {
    %c0 = arith.constant 0 : index
    %c0_0 = arith.constant 0 : index
    %c0_1 = arith.constant 0 : index
    %0 = vector.load %arg1[%c0, %c0_0, %c0_1] : memref<8x8x256xf32, #tpu.memory_space<vmem>>, vector<8x8x256xf32>
    %1 = vector.shape_cast %0 : vector<8x8x256xf32> to vector<64x256xf32>
    %c0_2 = arith.constant 0 : index
    %c0_3 = arith.constant 0 : index
    %2 = vector.load %arg2[%c0_2, %c0_3] : memref<256x128xf32, #tpu.memory_space<vmem>>, vector<256x128xf32>
    %cst = arith.constant dense<0.000000e+00> : vector<64x128xf32>
    %3 = tpu.matmul %1, %2, %cst {dimension_numbers = #tpu.dot_dimension_numbers<[1], [0], [0], [1], [0, 0, 1, 1], [], []>} : vector<64x256xf32>, vector<256x128xf32>, vector<64x128xf32> -> vector<64x128xf32>
    %c0_4 = arith.constant 0 : index
    %c0_5 = arith.constant 0 : index
    %4 = vector.load %arg3[%c0_4, %c0_5] : memref<1x128xf32, #tpu.memory_space<vmem>>, vector<1x128xf32>
    %5 = vector.broadcast %4 : vector<1x128xf32> to vector<64x128xf32>
    %6 = arith.addf %3, %5 : vector<64x128xf32>
    %7 = math.tanh %6 : vector<64x128xf32>
    %c0_6 = arith.constant 0 : index
    %c0_7 = arith.constant 0 : index
    %8 = vector.load %arg4[%c0_6, %c0_7] : memref<1x128xf32, #tpu.memory_space<vmem>>, vector<1x128xf32>
    %9 = vector.broadcast %8 : vector<1x128xf32> to vector<64x128xf32>
    %10 = arith.mulf %7, %9 : vector<64x128xf32>
    %cst_8 = arith.constant dense<0.000000e+00> : vector<64xf32>
    %11 = vector.multi_reduction <add>, %10, %cst_8 [1] : vector<64x128xf32> to vector<64xf32>
    %12 = vector.shape_cast %11 : vector<64xf32> to vector<64x1xf32>
    %c0_9 = arith.constant 0 : index
    %c0_10 = arith.constant 0 : index
    %13 = memref.load %arg5[%c0_9, %c0_10] : memref<1x1xf32, #tpu.memory_space<smem>>
    %14 = vector.broadcast %13 : f32 to vector<64x1xf32>
    %15 = arith.addf %12, %14 : vector<64x1xf32>
    %16 = vector.shape_cast %15 : vector<64x1xf32> to vector<8x8x1xf32>
    %cst_11 = arith.constant dense<0xFF800000> : vector<8x1xf32>
    %17 = vector.multi_reduction <maximumf>, %16, %cst_11 [1] : vector<8x8x1xf32> to vector<8x1xf32>
    %18 = vector.shape_cast %17 : vector<8x1xf32> to vector<8x1x1xf32>
    %19 = vector.broadcast %18 : vector<8x1x1xf32> to vector<8x8x1xf32>
    %20 = arith.subf %16, %19 : vector<8x8x1xf32>
    %21 = math.exp %20 : vector<8x8x1xf32>
    %cst_12 = arith.constant dense<0.000000e+00> : vector<8x1xf32>
    %22 = vector.multi_reduction <add>, %21, %cst_12 [1] : vector<8x8x1xf32> to vector<8x1xf32>
    %23 = vector.shape_cast %22 : vector<8x1xf32> to vector<8x1x1xf32>
    %24 = vector.broadcast %23 : vector<8x1x1xf32> to vector<8x8x1xf32>
    %25 = arith.divf %21, %24 : vector<8x8x1xf32>
    %26 = vector.broadcast %25 : vector<8x8x1xf32> to vector<8x8x256xf32>
    %27 = arith.mulf %0, %26 : vector<8x8x256xf32>
    %cst_13 = arith.constant dense<0.000000e+00> : vector<8x256xf32>
    %28 = vector.multi_reduction <add>, %27, %cst_13 [1] : vector<8x8x256xf32> to vector<8x256xf32>
    %c0_14 = arith.constant 0 : index
    %c0_15 = arith.constant 0 : index
    %29 = vector.load %arg6[%c0_14, %c0_15] : memref<8x256xf32, #tpu.memory_space<vmem>>, vector<8x256xf32>
    tpu.vector_store %arg6[%c0_14, %c0_15], %28 {strides = array<i32>} : memref<8x256xf32, #tpu.memory_space<vmem>>, vector<8x256xf32>,
    return
  }
  func.func @transform_0(%arg0: i32) -> (i32, i32, i32) {
    %c0_i32 = arith.constant 0 : i32
    %c0_i32_0 = arith.constant 0 : i32
    %c0_i32_1 = arith.constant 0 : i32
    return %arg0, %c0_i32, %c0_i32_0 : i32, i32, i32
  }
  func.func @transform_1(%arg0: i32) -> (i32, i32) {
    %c0_i32 = arith.constant 0 : i32
    %c0_i32_0 = arith.constant 0 : i32
    %c0_i32_1 = arith.constant 0 : i32
    return %c0_i32, %c0_i32_0 : i32, i32
  }
  func.func @transform_2(%arg0: i32) -> (i32, i32) {
    %c0_i32 = arith.constant 0 : i32
    %c0_i32_0 = arith.constant 0 : i32
    %c0_i32_1 = arith.constant 0 : i32
    return %c0_i32, %c0_i32_0 : i32, i32
  }
  func.func @transform_3(%arg0: i32) -> (i32, i32) {
    %c0_i32 = arith.constant 0 : i32
    %c0_i32_0 = arith.constant 0 : i32
    %c0_i32_1 = arith.constant 0 : i32
    return %c0_i32, %c0_i32_0 : i32, i32
  }
  func.func @transform_4(%arg0: i32) -> (i32, i32) {
    %c0_i32 = arith.constant 0 : i32
    %c0_i32_0 = arith.constant 0 : i32
    %c0_i32_1 = arith.constant 0 : i32
    return %c0_i32, %c0_i32_0 : i32, i32
  }
  func.func @transform_5(%arg0: i32) -> (i32, i32) {
    %c0_i32 = arith.constant 0 : i32
    %c0_i32_0 = arith.constant 0 : i32
    return %arg0, %c0_i32 : i32, i32
  }
}

</mosaic_0001>

<llo_original>
// kernel: tpu_custom_call.1
$region0: #{tpu_custom_call.1}
  #allocation0 [shape = 'u32[]', space=smem, size = 0x4, offset = 0x4, fixed_abs, tag = 'smem constant byte address 0x4 - core index']
  #allocation1 [shape = 'u32[144,128]{1,0:T(1,128)}', space=vmem, size = 0x12000, scoped, tag = 'internal scratch']
  #allocation2 [shape = 'f32[1,1]{1,0:T(1,128)S(6)}', space=smem, size = 0x200, scoped, tag = 'scoped memory for tpu_custom_call.1']
  %s0 = inlined_call_operand.hbm [shape: f32[16,8,256], index: 0, kind: input, shape index: {}]
  %s1 = inlined_call_operand.hbm [shape: f32[256,128], index: 1, kind: input, shape index: {}]
  %s2 = inlined_call_operand.vmem [shape: f32[1,128], index: 2, kind: input, shape index: {}]
  %s3 = inlined_call_operand.vmem [shape: f32[1,128], index: 3, kind: input, shape index: {}]
  %s4 = inlined_call_operand.<no memory space> [shape: f32[1,1], index: 4, kind: input, shape index: {}]
  %s5 = inlined_call_operand.hbm [shape: f32[16,256], index: 5, kind: output, shape index: {}]
  %s6 = sld [smem:[#allocation0]]
  $region61: #{tpu_custom_call.1} parent=0
    _
  %s8 = ssub.s32 1, %s6
  %s9 = scalar_select 0, %s8, %s6
  %10 = sst [smem:[#allocation2]] %s4
  $region1: #{tpu_custom_call.1} parent=0
    #allocation3 [shape = 'u8[131072]{0}', space=vmem, size = 0x20000, scoped, tag = 'input window, operand 0']
    #allocation4 [shape = 's32[2]{0}', space=sflag, size = 0x8, scoped, tag = 'scoped memory for tpu_custom_call.1']
    #allocation5 [shape = 's32[2]{0}', space=sflag, size = 0x8, scoped, tag = 'scoped memory for tpu_custom_call.1']
    #allocation6 [shape = 'u8[131072]{0}', space=vmem, size = 0x20000, scoped, tag = 'input window, operand 1, single buffered']
    #allocation7 [shape = 's32[1]{0}', space=sflag, size = 0x4, scoped, tag = 'scoped memory for tpu_custom_call.1']
    #allocation8 [shape = 'u8[16384]{0}', space=vmem, size = 0x4000, scoped, tag = 'output window, operand 0']
    %11 = vsyncpa [#allocation4], 0
    %s12 = scalar_lea.sflag [#allocation4], 1
    %13 = vsyncpa %s12, 0
    %14 = vsyncpa [#allocation7], 0
    %15 = vsyncpa [#allocation5], 0
    %s16 = scalar_lea.sflag [#allocation5], 1
    %17 = vsyncpa %s16, 0
    loop: start=0, step=1, limit=4
    $region2: #{tpu_custom_call.1} parent=1 // loop_pre_header
      _
    $region3: #{tpu_custom_call.1} parent=1 // loop_header
      %s19 = sphi 0, %s23
      %p20 = scmp.ge.s32.totalorder %s19, 4
      %s29 = sphi 0, %s31
      %s32 = sphi 0, %s29
      %s33 = sphi 0, %s32
      %s49 = sphi 0, %s33
      %s53 = sphi 0, %s53
      %s55 = sphi 0, %s53
      %s56 = sphi 0, %s55
      %s70 = sphi 0, %s56
      %s74 = sphi 0, %s74
      %s76 = sphi 0, %s74
      %s77 = sphi 0, %s76
      %s91 = sphi 0, %s77
      %s95 = sphi 0, %s95
      %s97 = sphi 0, %s95
      %s98 = sphi 0, %s97
      %s112 = sphi 0, %s98
      %s116 = sphi 0, %s116
      %s118 = sphi 0, %s116
      %s119 = sphi 0, %s118
      %s133 = sphi 0, %s119
      %s139 = sphi 0, %s141
      %s142 = sphi 0, %s139
      %s143 = sphi 0, %s142
      %s159 = sphi 0, %s143
    $region4: #{tpu_custom_call.1} parent=1 // loop_header_branch
      %22 = sbr.rel (%p20) target = $region8
    $region5: #{tpu_custom_call.1} parent=1 // loop_body
      %s24 = ssub.s32 %s19, 1
      %s25 = ssub.s32 %s19, 2
      %s26 = sadd.s32 %s19, 1
      %s27 = ssub.s32 %s19, %s26
      %p28 = scmp.eq.s32.totalorder %s27, 0
      %s30 = sadd.s32 %s29, 1
      %s31 = scalar_select %p28, %s29, %s30
      %p34 = pneg %p28
      %p35 = scmp.eq.s32.totalorder %s19, 1
      %p36 = por %p34, %p35
      %p37 = scmp.ne.s32.totalorder %s29, %s32
      %p38 = scmp.eq.s32.totalorder %s19, 0
      %p39 = por %p37, %p38
      %p40 = scmp.ne.s32.totalorder %s29, %s32
      %p41 = scmp.eq.s32.totalorder %s24, 1
      %p42 = por %p40, %p41
      %p43 = scmp.ne.s32.totalorder %s32, %s33
      %p44 = scmp.eq.s32.totalorder %s24, 0
      %p45 = por %p43, %p44
      %p46 = scmp.ne.s32.totalorder %s32, %s33
      %p47 = scmp.eq.s32.totalorder %s25, 1
      %p48 = por %p46, %p47
      %p50 = scmp.ne.s32.totalorder %s33, %s49
      %p51 = scmp.eq.s32.totalorder %s25, 0
      %p52 = por %p50, %p51
      %s54 = sadd.s32 %s53, 1
      %p57 = scmp.eq.s32.totalorder %s19, 1
      %p58 = scmp.ne.s32.totalorder %s53, %s55
      %p59 = scmp.eq.s32.totalorder %s19, 0
      %p60 = por %p58, %p59
      %p61 = scmp.ne.s32.totalorder %s53, %s55
      %p62 = scmp.eq.s32.totalorder %s24, 1
      %p63 = por %p61, %p62
      %p64 = scmp.ne.s32.totalorder %s55, %s56
      %p65 = scmp.eq.s32.totalorder %s24, 0
      %p66 = por %p64, %p65
      %p67 = scmp.ne.s32.totalorder %s55, %s56
      %p68 = scmp.eq.s32.totalorder %s25, 1
      %p69 = por %p67, %p68
      %p71 = scmp.ne.s32.totalorder %s56, %s70
      %p72 = scmp.eq.s32.totalorder %s25, 0
      %p73 = por %p71, %p72
      %s75 = sadd.s32 %s74, 1
      %p78 = scmp.eq.s32.totalorder %s19, 1
      %p79 = scmp.ne.s32.totalorder %s74, %s76
      %p80 = scmp.eq.s32.totalorder %s19, 0
      %p81 = por %p79, %p80
      %p82 = scmp.ne.s32.totalorder %s74, %s76
      %p83 = scmp.eq.s32.totalorder %s24, 1
      %p84 = por %p82, %p83
      %p85 = scmp.ne.s32.totalorder %s76, %s77
      %p86 = scmp.eq.s32.totalorder %s24, 0
      %p87 = por %p85, %p86
      %p88 = scmp.ne.s32.totalorder %s76, %s77
      %p89 = scmp.eq.s32.totalorder %s25, 1
      %p90 = por %p88, %p89
      %p92 = scmp.ne.s32.totalorder %s77, %s91
      %p93 = scmp.eq.s32.totalorder %s25, 0
      %p94 = por %p92, %p93
      %s96 = sadd.s32 %s95, 1
      %p99 = scmp.eq.s32.totalorder %s19, 1
      %p100 = scmp.ne.s32.totalorder %s95, %s97
      %p101 = scmp.eq.s32.totalorder %s19, 0
      %p102 = por %p100, %p101
      %p103 = scmp.ne.s32.totalorder %s95, %s97
      %p104 = scmp.eq.s32.totalorder %s24, 1
      %p105 = por %p103, %p104
      %p106 = scmp.ne.s32.totalorder %s97, %s98
      %p107 = scmp.eq.s32.totalorder %s24, 0
      %p108 = por %p106, %p107
      %p109 = scmp.ne.s32.totalorder %s97, %s98
      %p110 = scmp.eq.s32.totalorder %s25, 1
      %p111 = por %p109, %p110
      %p113 = scmp.ne.s32.totalorder %s98, %s112
      %p114 = scmp.eq.s32.totalorder %s25, 0
      %p115 = por %p113, %p114
      %s117 = sadd.s32 %s116, 1
      %p120 = scmp.eq.s32.totalorder %s19, 1
      %p121 = scmp.ne.s32.totalorder %s116, %s118
      %p122 = scmp.eq.s32.totalorder %s19, 0
      %p123 = por %p121, %p122
      %p124 = scmp.ne.s32.totalorder %s116, %s118
      %p125 = scmp.eq.s32.totalorder %s24, 1
      %p126 = por %p124, %p125
      %p127 = scmp.ne.s32.totalorder %s118, %s119
      %p128 = scmp.eq.s32.totalorder %s24, 0
      %p129 = por %p127, %p128
      %p130 = scmp.ne.s32.totalorder %s118, %s119
      %p131 = scmp.eq.s32.totalorder %s25, 1
      %p132 = por %p130, %p131
      %p134 = scmp.ne.s32.totalorder %s119, %s133
      %p135 = scmp.eq.s32.totalorder %s25, 0
      %p136 = por %p134, %p135
      %s137 = ssub.s32 %s19, %s26
      %p138 = scmp.eq.s32.totalorder %s137, 0
      %s140 = sadd.s32 %s139, 1
      %s141 = scalar_select %p138, %s139, %s140
      %p144 = pneg %p138
      %p145 = scmp.eq.s32.totalorder %s19, 1
      %p146 = por %p144, %p145
      %p147 = scmp.ne.s32.totalorder %s139, %s142
      %p148 = scmp.eq.s32.totalorder %s19, 0
      %p149 = por %p147, %p148
      %p150 = scmp.ne.s32.totalorder %s139, %s142
      %p151 = scmp.eq.s32.totalorder %s24, 1
      %p152 = por %p150, %p151
      %p153 = scmp.ne.s32.totalorder %s142, %s143
      %p154 = scmp.eq.s32.totalorder %s24, 0
      %p155 = por %p153, %p154
      %p156 = scmp.ne.s32.totalorder %s142, %s143
      %p157 = scmp.eq.s32.totalorder %s25, 1
      %p158 = por %p156, %p157
      %p160 = scmp.ne.s32.totalorder %s143, %s159
      %p161 = scmp.eq.s32.totalorder %s25, 0
      %p162 = por %p160, %p161
      %p163 = scmp.le.s32.totalorder 1, %s19
      %p164 = scmp.lt.s32.totalorder %s19, 3
      %p165 = pnand %p163, %p164
      %p166 = pneg %p165
      // Predicated region
      $region9: #{tpu_custom_call.1} parent=5 // pred_check
        _
      $region10: #{tpu_custom_call.1} parent=5 // pred_check_branch
        %168 = sbr.rel (%p165) target = $region12
      $region11: #{tpu_custom_call.1} parent=5 // pred_region
        %s169 = ssub.s32 %s19, 1
        // Predicated region
        $region13: #{tpu_custom_call.1} parent=11 // pred_check
          %p170 = pneg %p66
        $region14: #{tpu_custom_call.1} parent=11 // pred_check_branch
          %172 = sbr.rel (%p170) target = $region16
        $region15: #{tpu_custom_call.1} parent=11 // pred_region
          %s174 = ssub.s32 4096, 4096
          %175 = vsyncadd [#allocation7], %s174
          %s176 = sshll.u32 [#allocation6], 4
          %s177 = int_to_ptr.vmem [resolvable:$true] %s176
          %182 = dma.hbm_to_vmem [thread:$0]  %s1, 4096, %s177, [#allocation7], 128, 128, 8
        $region16: #{tpu_custom_call.1} parent=11 // pred_fallthru
          _
        // Predicated region
        $region17: #{tpu_custom_call.1} parent=11 // pred_check
          %p183 = pneg %p87
        $region18: #{tpu_custom_call.1} parent=11 // pred_check_branch
          %185 = sbr.rel (%p183) target = $region20
        $region19: #{tpu_custom_call.1} parent=11 // pred_region
          _
        $region20: #{tpu_custom_call.1} parent=11 // pred_fallthru
          _
        // Predicated region
        $region21: #{tpu_custom_call.1} parent=11 // pred_check
          %p186 = pneg %p108
        $region22: #{tpu_custom_call.1} parent=11 // pred_check_branch
          %188 = sbr.rel (%p186) target = $region24
        $region23: #{tpu_custom_call.1} parent=11 // pred_region
          _
        $region24: #{tpu_custom_call.1} parent=11 // pred_fallthru
          _
        // Predicated region
        $region25: #{tpu_custom_call.1} parent=11 // pred_check
          %p189 = pneg %p129
        $region26: #{tpu_custom_call.1} parent=11 // pred_check_branch
          %191 = sbr.rel (%p189) target = $region28
        $region27: #{tpu_custom_call.1} parent=11 // pred_region
          _
        $region28: #{tpu_custom_call.1} parent=11 // pred_fallthru
          _
      $region12: #{tpu_custom_call.1} parent=5 // pred_fallthru
        _
      %p192 = scmp.lt.s32.totalorder %s19, 2
      // Predicated region
      $region29: #{tpu_custom_call.1} parent=5 // pred_check
        %p193 = pneg %p192
      $region30: #{tpu_custom_call.1} parent=5 // pred_check_branch
        %195 = sbr.rel (%p193) target = $region32
      $region31: #{tpu_custom_call.1} parent=5 // pred_region
        // Predicated region
        $region33: #{tpu_custom_call.1} parent=31 // pred_check
          %p196 = pneg %p39
        $region34: #{tpu_custom_call.1} parent=31 // pred_check_branch
          %198 = sbr.rel (%p196) target = $region36
        $region35: #{tpu_custom_call.1} parent=31 // pred_region
          %s199 = sand.u32 %s29, 1
          %s200 = scalar_lea.sflag [#allocation4], %s199
          %s201 = sand.u32 %s29, 1
          %s202 = smul.addr %s201, 128
          %s203 = scalar_lea.vmem [#allocation3], %s202
          %s204 = smul.u32 8, %s19
          %s206 = ssub.s32 2048, 2048
          %207 = vsyncadd %s200, %s206
          %s208 = smul.addr %s204, 2
          %s209 = smul.addr %s208, 128
          %s210 = scalar_lea.hbm %s0, %s209
          %s211 = sshll.u32 %s203, 4
          %s212 = int_to_ptr.vmem [resolvable:$true] %s211
          %217 = dma.hbm_to_vmem [thread:$0]  %s210, 2048, %s212, %s200, 256, 256, 16
        $region36: #{tpu_custom_call.1} parent=31 // pred_fallthru
          _
      $region32: #{tpu_custom_call.1} parent=5 // pred_fallthru
        _
      %p218 = scmp.le.s32.totalorder 1, %s19
      %p219 = scmp.lt.s32.totalorder %s19, 3
      %p220 = pnand %p218, %p219
      %p221 = pneg %p220
      // Predicated region
      $region37: #{tpu_custom_call.1} parent=5 // pred_check
        _
      $region38: #{tpu_custom_call.1} parent=5 // pred_check_branch
        %223 = sbr.rel (%p220) target = $region40
      $region39: #{tpu_custom_call.1} parent=5 // pred_region
        %s224 = ssub.s32 %s19, 1
        %s225 = sand.u32 %s32, 1
        %s226 = scalar_lea.sflag [#allocation4], %s225
        %s227 = sand.u32 %s32, 1
        %s228 = smul.addr %s227, 128
        %s229 = scalar_lea.vmem [#allocation3], %s228
        // Predicated region
        $region41: #{tpu_custom_call.1} parent=39 // pred_check
          %p230 = pneg %p45
        $region42: #{tpu_custom_call.1} parent=39 // pred_check_branch
          %232 = sbr.rel (%p230) target = $region44
        $region43: #{tpu_custom_call.1} parent=39 // pred_region
          %233 = dma.done %s226, 2048
        $region44: #{tpu_custom_call.1} parent=39 // pred_fallthru
          _
        // Predicated region
        $region45: #{tpu_custom_call.1} parent=39 // pred_check
          %p234 = pneg %p66
        $region46: #{tpu_custom_call.1} parent=39 // pred_check_branch
          %236 = sbr.rel (%p234) target = $region48
        $region47: #{tpu_custom_call.1} parent=39 // pred_region
          %237 = dma.done [#allocation7], 4096
        $region48: #{tpu_custom_call.1} parent=39 // pred_fallthru
          _
        %s238 = sand.u32 %s32, 1
        %s239 = scalar_lea.sflag [#allocation4], %s238
        %s240 = sand.u32 %s32, 1
        %s241 = smul.addr %s240, 128
        %s242 = scalar_lea.vmem [#allocation3], %s241
        %p243 = pneg %p45
        %p244 = pneg %p42
        %p245 = pneg %p66
        %p246 = pneg %p63
        %p247 = pneg %p87
        %p248 = pneg %p84
        %p249 = pneg %p108
        %p250 = pneg %p105
        %p251 = pneg %p129
        %p252 = pneg %p126
        %p253 = pneg %p155
        %p254 = pneg %p152
        %s255 = sand.u32 %s142, 1
        %s256 = scalar_lea.sflag [#allocation5], %s255
        %s257 = sand.u32 %s142, 1
        %s258 = smul.addr %s257, 16
        %s259 = scalar_lea.vmem [#allocation8], %s258
        %s260 = smul.u32 8, %s24
        %v261 = vld [vmem:[%s229] sm:$0xff]
        %v262 = vld [vmem:[%s229 + $0x8] sm:$0xff]
        %v263 = vld [vmem:[%s229 + $0x10] sm:$0xff]
        %v264 = vld [vmem:[%s229 + $0x18] sm:$0xff]
        %v265 = vld [vmem:[%s229 + $0x20] sm:$0xff]
        %v266 = vld [vmem:[%s229 + $0x28] sm:$0xff]
        %v267 = vld [vmem:[%s229 + $0x30] sm:$0xff]
        %v268 = vld [vmem:[%s229 + $0x38] sm:$0xff]
        %v269 = vld [vmem:[%s229 + $0x40] sm:$0xff]
        %v270 = vld [vmem:[%s229 + $0x48] sm:$0xff]
        %v271 = vld [vmem:[%s229 + $0x50] sm:$0xff]
        %v272 = vld [vmem:[%s229 + $0x58] sm:$0xff]
        %v273 = vld [vmem:[%s229 + $0x60] sm:$0xff]
        %v274 = vld [vmem:[%s229 + $0x68] sm:$0xff]
        %v275 = vld [vmem:[%s229 + $0x70] sm:$0xff]
        %v276 = vld [vmem:[%s229 + $0x78] sm:$0xff]
        %v277 = vld [vmem:[#allocation6] sm:$0xff]
        %v278 = vld [vmem:[#allocation6 + $0x8] sm:$0xff]
        %v279 = vld [vmem:[#allocation6 + $0x10] sm:$0xff]
        %v280 = vld [vmem:[#allocation6 + $0x18] sm:$0xff]
        %v281 = vld [vmem:[#allocation6 + $0x20] sm:$0xff]
        %v282 = vld [vmem:[#allocation6 + $0x28] sm:$0xff]
        %v283 = vld [vmem:[#allocation6 + $0x30] sm:$0xff]
        %v284 = vld [vmem:[#allocation6 + $0x38] sm:$0xff]
        %v285 = vld [vmem:[#allocation6 + $0x40] sm:$0xff]
        %v286 = vld [vmem:[#allocation6 + $0x48] sm:$0xff]
        %v287 = vld [vmem:[#allocation6 + $0x50] sm:$0xff]
        %v288 = vld [vmem:[#allocation6 + $0x58] sm:$0xff]
        %v289 = vld [vmem:[#allocation6 + $0x60] sm:$0xff]
        %v290 = vld [vmem:[#allocation6 + $0x68] sm:$0xff]
        %v291 = vld [vmem:[#allocation6 + $0x70] sm:$0xff]
        %v292 = vld [vmem:[#allocation6 + $0x78] sm:$0xff]
        %v293 = vld [vmem:[#allocation6 + $0x80] sm:$0xff]
        %v294 = vld [vmem:[#allocation6 + $0x88] sm:$0xff]
        %v295 = vld [vmem:[#allocation6 + $0x90] sm:$0xff]
        %v296 = vld [vmem:[#allocation6 + $0x98] sm:$0xff]
        %v297 = vld [vmem:[#allocation6 + $0xa0] sm:$0xff]
        %v298 = vld [vmem:[#allocation6 + $0xa8] sm:$0xff]
        %v299 = vld [vmem:[#allocation6 + $0xb0] sm:$0xff]
        %v300 = vld [vmem:[#allocation6 + $0xb8] sm:$0xff]
        %v301 = vld [vmem:[#allocation6 + $0xc0] sm:$0xff]
        %v302 = vld [vmem:[#allocation6 + $0xc8] sm:$0xff]
        %v303 = vld [vmem:[#allocation6 + $0xd0] sm:$0xff]
        %v304 = vld [vmem:[#allocation6 + $0xd8] sm:$0xff]
        %v305 = vld [vmem:[#allocation6 + $0xe0] sm:$0xff]
        %v306 = vld [vmem:[#allocation6 + $0xe8] sm:$0xff]
        %v307 = vld [vmem:[#allocation6 + $0xf0] sm:$0xff]
        %v308 = vld [vmem:[#allocation6 + $0xf8] sm:$0xff]
        %v309 = vld [vmem:[%s2] sm:$0x1]
        %v311 = vlaneseq
        %v312 = vshrl.u32 %v311, 7
        %v313 = vsub.s32 0, %v312
        %v314 = vrot.slane %v309, %v313
        %316 = vmatprep.subr.mxu0 0.0
        %317 = vmatpush1.msra.mxu0 %v277
        %318 = vmatprep.subr.mxu0 0.0
        %319 = vmatpush1.msra.mxu0 %v278
        %320 = vmatprep.subr.mxu0 0.0
        %321 = vmatpush1.msra.mxu0 %v279
        %322 = vmatprep.subr.mxu0 0.0
        %323 = vmatpush1.msra.mxu0 %v280
        %324 = vmatprep.subr.mxu0 0.0
        %325 = vmatpush1.msra.mxu0 %v281
        %326 = vmatprep.subr.mxu0 0.0
        %327 = vmatpush1.msra.mxu0 %v282
        %328 = vmatprep.subr.mxu0 0.0
        %329 = vmatpush1.msra.mxu0 %v283
        %330 = vmatprep.subr.mxu0 0.0
        %331 = vmatpush1.msra.mxu0 %v284
        %332 = vmatprep.subr.mxu0 0.0
        %333 = vmatpush1.msra.mxu0 %v285
        %334 = vmatprep.subr.mxu0 0.0
        %335 = vmatpush1.msra.mxu0 %v286
        %336 = vmatprep.subr.mxu0 0.0
        %337 = vmatpush1.msra.mxu0 %v287
        %338 = vmatprep.subr.mxu0 0.0
        %339 = vmatpush1.msra.mxu0 %v288
        %340 = vmatprep.subr.mxu0 0.0
        %341 = vmatpush1.msra.mxu0 %v289
        %342 = vmatprep.subr.mxu0 0.0
        %343 = vmatpush1.msra.mxu0 %v290
        %344 = vmatprep.subr.mxu0 0.0
        %345 = vmatpush1.msra.mxu0 %v291
        %346 = vmatprep.subr.mxu0 0.0
        %347 = vmatpush1.msra.mxu0 %v292
        %348 = vmatprep.subr.mxu0 0.0
        %349 = vmatpush1.msra.mxu0 %v293
        %350 = vmatprep.subr.mxu0 0.0
        %351 = vmatpush1.msra.mxu0 %v294
        %352 = vmatprep.subr.mxu0 0.0
        %353 = vmatpush1.msra.mxu0 %v295
        %354 = vmatprep.subr.mxu0 0.0
        %355 = vmatpush1.msra.mxu0 %v296
        %356 = vmatprep.subr.mxu0 0.0
        %357 = vmatpush1.msra.mxu0 %v297
        %358 = vmatprep.subr.mxu0 0.0
        %359 = vmatpush1.msra.mxu0 %v298
        %360 = vmatprep.subr.mxu0 0.0
        %361 = vmatpush1.msra.mxu0 %v299
        %362 = vmatprep.subr.mxu0 0.0
        %363 = vmatpush1.msra.mxu0 %v300
        %364 = vmatprep.subr.mxu0 0.0
        %365 = vmatpush1.msra.mxu0 %v301
        %366 = vmatprep.subr.mxu0 0.0
        %367 = vmatpush1.msra.mxu0 %v302
        %368 = vmatprep.subr.mxu0 0.0
        %369 = vmatpush1.msra.mxu0 %v303
        %370 = vmatprep.subr.mxu0 0.0
        %371 = vmatpush1.msra.mxu0 %v304
        %372 = vmatprep.subr.mxu0 0.0
        %373 = vmatpush1.msra.mxu0 %v305
        %374 = vmatprep.subr.mxu0 0.0
        %375 = vmatpush1.msra.mxu0 %v306
        %376 = vmatprep.subr.mxu0 0.0
        %377 = vmatpush1.msra.mxu0 %v307
        %378 = vmatprep.subr.mxu0 0.0
        %379 = vmatpush1.msra.mxu0 %v308
        %380 = vmatprep.mubr.f32.mxu0 %v262
        %381 = vmatmul.mubr.f32.gmra.mrb[0].mxu0 %v261
        %v382 = vpop.f32.mrb[0].mxu0
        %v383 = vadd.f32 %v314, %v382
        %v384 = vpop.f32.mrb[0].mxu0
        %385 = vmatprep.mubr.f32.mxu0 %v264
        %386 = vmatmul.mubr.f32.gmra.mrb[0].mxu0 %v263
        %v387 = vpop.f32.mrb[0].mxu0
        %v388 = vadd.f32 %v314, %v387
        %v389 = vpop.f32.mrb[0].mxu0
        %390 = vmatprep.mubr.f32.mxu0 %v266
        %391 = vmatmul.mubr.f32.gmra.mrb[0].mxu0 %v265
        %v392 = vpop.f32.mrb[0].mxu0
        %v393 = vadd.f32 %v314, %v392
        %v394 = vpop.f32.mrb[0].mxu0
        %395 = vmatprep.mubr.f32.mxu0 %v268
        %396 = vmatmul.mubr.f32.gmra.mrb[0].mxu0 %v267
        %v397 = vpop.f32.mrb[0].mxu0
        %v398 = vadd.f32 %v314, %v397
        %v399 = vpop.f32.mrb[0].mxu0
        %400 = vmatprep.mubr.f32.mxu0 %v270
        %401 = vmatmul.mubr.f32.gmra.mrb[0].mxu0 %v269
        %v402 = vpop.f32.mrb[0].mxu0
        %v403 = vadd.f32 %v314, %v402
        %v404 = vpop.f32.mrb[0].mxu0
        %405 = vmatprep.mubr.f32.mxu0 %v272
        %406 = vmatmul.mubr.f32.gmra.mrb[0].mxu0 %v271
        %v407 = vpop.f32.mrb[0].mxu0
        %v408 = vadd.f32 %v314, %v407
        %v409 = vpop.f32.mrb[0].mxu0
        %410 = vmatprep.mubr.f32.mxu0 %v274
        %411 = vmatmul.mubr.f32.gmra.mrb[0].mxu0 %v273
        %v412 = vpop.f32.mrb[0].mxu0
        %v413 = vadd.f32 %v314, %v412
        %v414 = vpop.f32.mrb[0].mxu0
        %415 = vmatprep.mubr.f32.mxu0 %v276
        %416 = vmatmul.mubr.f32.gmra.mrb[0].mxu0 %v275
        %v417 = vpop.f32.mrb[0].mxu0
        %v418 = vadd.f32 %v314, %v417
        %v419 = vpop.f32.mrb[0].mxu0
        %420 = vdwg.mxu0
        %v421 = vtanh.pop %v383
        %v422 = vtanh.pop %v388
        %v423 = vtanh.pop %v393
        %v424 = vtanh.pop %v398
        %v425 = vtanh.pop %v403
        %v426 = vtanh.pop %v408
        %v427 = vtanh.pop %v413
        %v428 = vtanh.pop %v418
        %v429 = vld [vmem:[%s3] sm:$0x1]
        %v431 = vlaneseq
        %v432 = vshrl.u32 %v431, 7
        %v433 = vsub.s32 0, %v432
        %v434 = vrot.slane %v429, %v433
        %v436 = vmul.f32 %v421, %v434
        %v437 = vmul.f32 %v422, %v434
        %v438 = vmul.f32 %v423, %v434
        %v439 = vmul.f32 %v424, %v434
        %v440 = vmul.f32 %v425, %v434
        %v441 = vmul.f32 %v426, %v434
        %v442 = vmul.f32 %v427, %v434
        %v443 = vmul.f32 %v428, %v434
        %444 = vadd.xlane.f32.xlu0 %v436
        %v445 = vpop.xlane.xlu0 %444
        %446 = vadd.xlane.f32.xlu0 %v437
        %v447 = vpop.xlane.xlu0 %446
        %448 = vadd.xlane.f32.xlu0 %v438
        %v449 = vpop.xlane.xlu0 %448
        %450 = vadd.xlane.f32.xlu0 %v439
        %v451 = vpop.xlane.xlu0 %450
        %452 = vadd.xlane.f32.xlu0 %v440
        %v453 = vpop.xlane.xlu0 %452
        %454 = vadd.xlane.f32.xlu0 %v441
        %v455 = vpop.xlane.xlu0 %454
        %456 = vadd.xlane.f32.xlu0 %v442
        %v457 = vpop.xlane.xlu0 %456
        %458 = vadd.xlane.f32.xlu0 %v443
        %v459 = vpop.xlane.xlu0 %458
        %s460 = sld [smem:[#allocation2]]
        %v461 = vstv %s460
        %v462 = vadd.f32 %v445, %v461
        %v463 = vadd.f32 %v447, %v461
        %v464 = vadd.f32 %v449, %v461
        %v465 = vadd.f32 %v451, %v461
        %v466 = vadd.f32 %v453, %v461
        %v467 = vadd.f32 %v455, %v461
        %v468 = vadd.f32 %v457, %v461
        %v469 = vadd.f32 %v459, %v461
        %v470 = vrot.slane %v462, 4
        %v471 = vmax.f32 %v462, %v470
        %v472 = vrot.slane %v471, 2
        %v473 = vmax.f32 %v471, %v472
        %v474 = vrot.slane %v473, 1
        %v475 = vmax.f32 %v473, %v474
        %v476 = vrot.slane %v463, 4
        %v477 = vmax.f32 %v463, %v476
        %v478 = vrot.slane %v477, 2
        %v479 = vmax.f32 %v477, %v478
        %v480 = vrot.slane %v479, 1
        %v481 = vmax.f32 %v479, %v480
        %v482 = vrot.slane %v464, 4
        %v483 = vmax.f32 %v464, %v482
        %v484 = vrot.slane %v483, 2
        %v485 = vmax.f32 %v483, %v484
        %v486 = vrot.slane %v485, 1
        %v487 = vmax.f32 %v485, %v486
        %v488 = vrot.slane %v465, 4
        %v489 = vmax.f32 %v465, %v488
        %v490 = vrot.slane %v489, 2
        %v491 = vmax.f32 %v489, %v490
        %v492 = vrot.slane %v491, 1
        %v493 = vmax.f32 %v491, %v492
        %v494 = vrot.slane %v466, 4
        %v495 = vmax.f32 %v466, %v494
        %v496 = vrot.slane %v495, 2
        %v497 = vmax.f32 %v495, %v496
        %v498 = vrot.slane %v497, 1
        %v499 = vmax.f32 %v497, %v498
        %v500 = vrot.slane %v467, 4
        %v501 = vmax.f32 %v467, %v500
        %v502 = vrot.slane %v501, 2
        %v503 = vmax.f32 %v501, %v502
        %v504 = vrot.slane %v503, 1
        %v505 = vmax.f32 %v503, %v504
        %v506 = vrot.slane %v468, 4
        %v507 = vmax.f32 %v468, %v506
        %v508 = vrot.slane %v507, 2
        %v509 = vmax.f32 %v507, %v508
        %v510 = vrot.slane %v509, 1
        %v511 = vmax.f32 %v509, %v510
        %v512 = vrot.slane %v469, 4
        %v513 = vmax.f32 %v469, %v512
        %v514 = vrot.slane %v513, 2
        %v515 = vmax.f32 %v513, %v514
        %v516 = vrot.slane %v515, 1
        %v517 = vmax.f32 %v515, %v516
        %v518 = vsub.f32 %v462, %v475
        %v519 = vsub.f32 %v463, %v481
        %v520 = vsub.f32 %v464, %v487
        %v521 = vsub.f32 %v465, %v493
        %v522 = vsub.f32 %v466, %v499
        %v523 = vsub.f32 %v467, %v505
        %v524 = vsub.f32 %v468, %v511
        %v525 = vsub.f32 %v469, %v517
        %v526 = vmul.f32 %v518, 1.442695
        %v527 = vpow.pop %v526
        %v528 = vmul.f32 %v519, 1.442695
        %v529 = vpow.pop %v528
        %v530 = vmul.f32 %v520, 1.442695
        %v531 = vpow.pop %v530
        %v532 = vmul.f32 %v521, 1.442695
        %v533 = vpow.pop %v532
        %v534 = vmul.f32 %v522, 1.442695
        %v535 = vpow.pop %v534
        %v536 = vmul.f32 %v523, 1.442695
        %v537 = vpow.pop %v536
        %v538 = vmul.f32 %v524, 1.442695
        %v539 = vpow.pop %v538
        %v540 = vmul.f32 %v525, 1.442695
        %v541 = vpow.pop %v540
        %v542 = vrot.slane %v527, 4
        %v543 = vadd.f32 %v527, %v542
        %v544 = vrot.slane %v543, 2
        %v545 = vadd.f32 %v543, %v544
        %v546 = vrot.slane %v545, 1
        %v547 = vadd.f32 %v545, %v546
        %v548 = vrot.slane %v529, 4
        %v549 = vadd.f32 %v529, %v548
        %v550 = vrot.slane %v549, 2
        %v551 = vadd.f32 %v549, %v550
        %v552 = vrot.slane %v551, 1
        %v553 = vadd.f32 %v551, %v552
        %v554 = vrot.slane %v531, 4
        %v555 = vadd.f32 %v531, %v554
        %v556 = vrot.slane %v555, 2
        %v557 = vadd.f32 %v555, %v556
        %v558 = vrot.slane %v557, 1
        %v559 = vadd.f32 %v557, %v558
        %v560 = vrot.slane %v533, 4
        %v561 = vadd.f32 %v533, %v560
        %v562 = vrot.slane %v561, 2
        %v563 = vadd.f32 %v561, %v562
        %v564 = vrot.slane %v563, 1
        %v565 = vadd.f32 %v563, %v564
        %v566 = vrot.slane %v535, 4
        %v567 = vadd.f32 %v535, %v566
        %v568 = vrot.slane %v567, 2
        %v569 = vadd.f32 %v567, %v568
        %v570 = vrot.slane %v569, 1
        %v571 = vadd.f32 %v569, %v570
        %v572 = vrot.slane %v537, 4
        %v573 = vadd.f32 %v537, %v572
        %v574 = vrot.slane %v573, 2
        %v575 = vadd.f32 %v573, %v574
        %v576 = vrot.slane %v575, 1
        %v577 = vadd.f32 %v575, %v576
        %v578 = vrot.slane %v539, 4
        %v579 = vadd.f32 %v539, %v578
        %v580 = vrot.slane %v579, 2
        %v581 = vadd.f32 %v579, %v580
        %v582 = vrot.slane %v581, 1
        %v583 = vadd.f32 %v581, %v582
        %v584 = vrot.slane %v541, 4
        %v585 = vadd.f32 %v541, %v584
        %v586 = vrot.slane %v585, 2
        %v587 = vadd.f32 %v585, %v586
        %v588 = vrot.slane %v587, 1
        %v589 = vadd.f32 %v587, %v588
        %v590 = vrcp.pop %v547
        %v591 = vmul.f32 %v527, %v590
        %v592 = vrcp.pop %v553
        %v593 = vmul.f32 %v529, %v592
        %v594 = vrcp.pop %v559
        %v595 = vmul.f32 %v531, %v594
        %v596 = vrcp.pop %v565
        %v597 = vmul.f32 %v533, %v596
        %v598 = vrcp.pop %v571
        %v599 = vmul.f32 %v535, %v598
        %v600 = vrcp.pop %v577
        %v601 = vmul.f32 %v537, %v600
        %v602 = vrcp.pop %v583
        %v603 = vmul.f32 %v539, %v602
        %v604 = vrcp.pop %v589
        %v605 = vmul.f32 %v541, %v604
        %v606 = vmul.f32 %v261, %v591
        %v607 = vmul.f32 %v262, %v591
        %v608 = vmul.f32 %v263, %v593
        %v609 = vmul.f32 %v264, %v593
        %v610 = vmul.f32 %v265, %v595
        %v611 = vmul.f32 %v266, %v595
        %v612 = vmul.f32 %v267, %v597
        %v613 = vmul.f32 %v268, %v597
        %v614 = vmul.f32 %v269, %v599
        %v615 = vmul.f32 %v270, %v599
        %v616 = vmul.f32 %v271, %v601
        %v617 = vmul.f32 %v272, %v601
        %v618 = vmul.f32 %v273, %v603
        %v619 = vmul.f32 %v274, %v603
        %v620 = vmul.f32 %v275, %v605
        %v621 = vmul.f32 %v276, %v605
        %v622 = vrot.slane %v606, 4
        %v623 = vadd.f32 %v606, %v622
        %v624 = vrot.slane %v623, 2
        %v625 = vadd.f32 %v623, %v624
        %v626 = vrot.slane %v625, 1
        %v627 = vadd.f32 %v625, %v626
        %v628 = vrot.slane %v607, 4
        %v629 = vadd.f32 %v607, %v628
        %v630 = vrot.slane %v629, 2
        %v631 = vadd.f32 %v629, %v630
        %v632 = vrot.slane %v631, 1
        %v633 = vadd.f32 %v631, %v632
        %v634 = vrot.slane %v608, 4
        %v635 = vadd.f32 %v608, %v634
        %v636 = vrot.slane %v635, 2
        %v637 = vadd.f32 %v635, %v636
        %v638 = vrot.slane %v637, 1
        %v639 = vadd.f32 %v637, %v638
        %v640 = vrot.slane %v609, 4
        %v641 = vadd.f32 %v609, %v640
        %v642 = vrot.slane %v641, 2
        %v643 = vadd.f32 %v641, %v642
        %v644 = vrot.slane %v643, 1
        %v645 = vadd.f32 %v643, %v644
        %v646 = vrot.slane %v610, 4
        %v647 = vadd.f32 %v610, %v646
        %v648 = vrot.slane %v647, 2
        %v649 = vadd.f32 %v647, %v648
        %v650 = vrot.slane %v649, 1
        %v651 = vadd.f32 %v649, %v650
        %v652 = vrot.slane %v611, 4
        %v653 = vadd.f32 %v611, %v652
        %v654 = vrot.slane %v653, 2
        %v655 = vadd.f32 %v653, %v654
        %v656 = vrot.slane %v655, 1
        %v657 = vadd.f32 %v655, %v656
        %v658 = vrot.slane %v612, 4
        %v659 = vadd.f32 %v612, %v658
        %v660 = vrot.slane %v659, 2
        %v661 = vadd.f32 %v659, %v660
        %v662 = vrot.slane %v661, 1
        %v663 = vadd.f32 %v661, %v662
        %v664 = vrot.slane %v613, 4
        %v665 = vadd.f32 %v613, %v664
        %v666 = vrot.slane %v665, 2
        %v667 = vadd.f32 %v665, %v666
        %v668 = vrot.slane %v667, 1
        %v669 = vadd.f32 %v667, %v668
        %v670 = vrot.slane %v614, 4
        %v671 = vadd.f32 %v614, %v670
        %v672 = vrot.slane %v671, 2
        %v673 = vadd.f32 %v671, %v672
        %v674 = vrot.slane %v673, 1
        %v675 = vadd.f32 %v673, %v674
        %v676 = vrot.slane %v615, 4
        %v677 = vadd.f32 %v615, %v676
        %v678 = vrot.slane %v677, 2
        %v679 = vadd.f32 %v677, %v678
        %v680 = vrot.slane %v679, 1
        %v681 = vadd.f32 %v679, %v680
        %v682 = vrot.slane %v616, 4
        %v683 = vadd.f32 %v616, %v682
        %v684 = vrot.slane %v683, 2
        %v685 = vadd.f32 %v683, %v684
        %v686 = vrot.slane %v685, 1
        %v687 = vadd.f32 %v685, %v686
        %v688 = vrot.slane %v617, 4
        %v689 = vadd.f32 %v617, %v688
        %v690 = vrot.slane %v689, 2
        %v691 = vadd.f32 %v689, %v690
        %v692 = vrot.slane %v691, 1
        %v693 = vadd.f32 %v691, %v692
        %v694 = vrot.slane %v618, 4
        %v695 = vadd.f32 %v618, %v694
        %v696 = vrot.slane %v695, 2
        %v697 = vadd.f32 %v695, %v696
        %v698 = vrot.slane %v697, 1
        %v699 = vadd.f32 %v697, %v698
        %v700 = vrot.slane %v619, 4
        %v701 = vadd.f32 %v619, %v700
        %v702 = vrot.slane %v701, 2
        %v703 = vadd.f32 %v701, %v702
        %v704 = vrot.slane %v703, 1
        %v705 = vadd.f32 %v703, %v704
        %v706 = vrot.slane %v620, 4
        %v707 = vadd.f32 %v620, %v706
        %v708 = vrot.slane %v707, 2
        %v709 = vadd.f32 %v707, %v708
        %v710 = vrot.slane %v709, 1
        %v711 = vadd.f32 %v709, %v710
        %v712 = vrot.slane %v621, 4
        %v713 = vadd.f32 %v621, %v712
        %v714 = vrot.slane %v713, 2
        %v715 = vadd.f32 %v713, %v714
        %v716 = vrot.slane %v715, 1
        %v717 = vadd.f32 %v715, %v716
        %vm734 = vcmask 1041409
        %v735 = vsel %vm734, %v639, %v627
        %vm736 = vcmask 1042434
        %v737 = vsel %vm736, %v651, %v735
        %vm738 = vcmask 1043459
        %v739 = vsel %vm738, %v663, %v737
        %vm740 = vcmask 1044484
        %v741 = vsel %vm740, %v675, %v739
        %vm742 = vcmask 1045509
        %v743 = vsel %vm742, %v687, %v741
        %vm744 = vcmask 1046534
        %v745 = vsel %vm744, %v699, %v743
        %vm746 = vcmask 1047559
        %v747 = vsel %vm746, %v711, %v745
        %v748 = vsel %vm734, %v645, %v633
        %v749 = vsel %vm736, %v657, %v748
        %v750 = vsel %vm738, %v669, %v749
        %v751 = vsel %vm740, %v681, %v750
        %v752 = vsel %vm742, %v693, %v751
        %v753 = vsel %vm744, %v705, %v752
        %v754 = vsel %vm746, %v717, %v753
        %757 = vst [vmem:[%s259] sm:$0xff] %v747
        %758 = vst [vmem:[%s259 + $0x8] sm:$0xff] %v754
        %s759 = sand.u32 %s142, 1
        %s760 = scalar_lea.sflag [#allocation5], %s759
        %s761 = sand.u32 %s142, 1
        %s762 = smul.addr %s761, 16
        %s763 = scalar_lea.vmem [#allocation8], %s762
        // Predicated region
        $region49: #{tpu_custom_call.1} parent=39 // pred_check
          %p764 = pneg %p152
        $region50: #{tpu_custom_call.1} parent=39 // pred_check_branch
          %766 = sbr.rel (%p764) target = $region52
        $region51: #{tpu_custom_call.1} parent=39 // pred_region
          %s768 = ssub.s32 256, 256
          %769 = vsyncadd %s760, %s768
          %s770 = smul.addr %s24, 2
          %s771 = smul.addr %s770, 128
          %s772 = scalar_lea.hbm %s5, %s771
          %s774 = sshll.u32 %s763, 4
          %s775 = int_to_ptr.vmem [resolvable:$true] %s774
          %777 = dma.vmem_to_hbm [thread:$0]  %s775, 256, %s772, %s760
        $region52: #{tpu_custom_call.1} parent=39 // pred_fallthru
          _
      $region40: #{tpu_custom_call.1} parent=5 // pred_fallthru
        _
      %p778 = scmp.le.s32.totalorder 2, %s19
      // Predicated region
      $region53: #{tpu_custom_call.1} parent=5 // pred_check
        %p779 = pneg %p778
      $region54: #{tpu_custom_call.1} parent=5 // pred_check_branch
        %781 = sbr.rel (%p779) target = $region56
      $region55: #{tpu_custom_call.1} parent=5 // pred_region
        %s782 = ssub.s32 %s19, 2
        // Predicated region
        $region57: #{tpu_custom_call.1} parent=55 // pred_check
          %p783 = pneg %p158
        $region58: #{tpu_custom_call.1} parent=55 // pred_check_branch
          %785 = sbr.rel (%p783) target = $region60
        $region59: #{tpu_custom_call.1} parent=55 // pred_region
          %s786 = sand.u32 %s143, 1
          %s787 = scalar_lea.sflag [#allocation5], %s786
          %s788 = sand.u32 %s143, 1
          %s789 = smul.addr %s788, 16
          %s790 = scalar_lea.vmem [#allocation8], %s789
          %791 = dma.done %s787, 256
        $region60: #{tpu_custom_call.1} parent=55 // pred_fallthru
          _
      $region56: #{tpu_custom_call.1} parent=5 // pred_fallthru
        _
    $region6: #{tpu_custom_call.1} parent=1 // loop_footer
      %s23 = sadd.s32 1, %s19
    $region7: #{tpu_custom_call.1} parent=1 // loop_footer_branch
      %18 = sbr.rel target = $region3
    $region8: #{tpu_custom_call.1} parent=1 // loop_exit
      _
    %792 = vsyncpa [#allocation4], 1
    %s793 = scalar_lea.sflag [#allocation4], 1
    %794 = vsyncpa %s793, 1
    %795 = vsyncpa [#allocation7], 1
    %796 = vsyncpa [#allocation5], 1
    %s797 = scalar_lea.sflag [#allocation5], 1
    %798 = vsyncpa %s797, 1

</llo_original>
